<compile_context>
chip_gen: v6e
topology: v6e:2x2x1
jax: 0.10.0
libtpu: 0.0.40
codegen_flags: <defaults>
</compile_context>

<pallas_src>
import jax
import jax.numpy as jnp
from jax import lax
from jax.experimental import pallas as pl
from jax.experimental.pallas import tpu as pltpu


def sinusoidal_positional_encoding(seq_len: int, model_size: int, dtype=jnp.float32):
    """Standard Vaswani-style sinusoidal PE table of shape (seq_len, model_size)."""
    pos = jnp.arange(seq_len, dtype=jnp.float32)[:, None]           # (S, 1)
    i = jnp.arange(model_size, dtype=jnp.float32)[None, :]          # (1, D)
    angle_rates = 1.0 / jnp.power(10000.0, (2.0 * jnp.floor(i / 2.0)) / model_size)
    angles = pos * angle_rates                                       # (S, D)
    even = (jnp.arange(model_size) % 2) == 0
    pe = jnp.where(even[None, :], jnp.sin(angles), jnp.cos(angles))
    return pe.astype(dtype)


# ----------------------------- kernel -----------------------------

def _softmax_lastdim(e):
    """Numerically-stable softmax over the last (lane) axis; EUP reciprocal."""
    m = jnp.max(e, axis=-1, keepdims=True)
    p = jnp.exp(e - m)
    return p * pl.reciprocal(jnp.sum(p, axis=-1, keepdims=True), approx=True)


def _make_encoder_kernel(S_stack: int, S_buf: int, S_fin: int):
    S_sb = S_stack + S_buf

    def kernel(ctx_ref, idx_ref, len_ref, pe_ref, uq_ref, out_ref):
        ctx = ctx_ref[...]                                           # (Bt, T, D) bf16
        idx = idx_ref[...]                                           # (Bt, S_total) i32
        lens = len_ref[...]                                          # (Bt, 3) i32
        pe = pe_ref[...]                                             # (S_total, D) f32
        Bt, T, D = ctx.shape
        S_total = idx.shape[1]

        # 1) ONE fused one-hot MXU gather for [stack | buffer | finished] + PE add.
        #    bf16 one-hot x bf16 ctx with f32 accumulation is exact (one-hot is 0/1).
        onehot = (lax.broadcasted_iota(jnp.int32, (Bt, S_total, T), 2)
                  == idx[:, :, None]).astype(ctx.dtype)
        keys = jnp.einsum("bst,btd->bsd", onehot, ctx,
                          preferred_element_type=jnp.float32) + pe[None]   # (Bt, S_total, D) f32

        # 2) finished-tokens universal attention -> per-batch query.
        fin_keys = keys[:, S_sb:, :]                                 # (Bt, S_fin, D)
        uq = jnp.broadcast_to(uq_ref[...][None], (Bt, 1, D))         # learned query, f32
        e_f = jnp.einsum("bqd,bsd->bqs", uq, fin_keys,
                         preferred_element_type=jnp.float32)         # (Bt, 1, S_fin)
        pos_f = lax.broadcasted_iota(jnp.int32, (Bt, 1, S_fin), 2)
        e_f = jnp.where(pos_f < lens[:, 2][:, None, None], e_f, jnp.float32(-1e30))
        w_f = _softmax_lastdim(e_f)
        tok = jnp.einsum("bqs,bsd->bqd", w_f, fin_keys,
                         preferred_element_type=jnp.float32)         # (Bt, 1, D)

        # 3) fused stack+buffer attention (shared query): energies once, (Bt, 2, S) softmax.
        sb_keys = keys[:, :S_sb, :]                                  # (Bt, S_sb, D)
        e = jnp.einsum("bqd,bsd->bqs", tok, sb_keys,
                       preferred_element_type=jnp.float32)           # (Bt, 1, S_sb)
        pos = lax.broadcasted_iota(jnp.int32, (Bt, 2, S_sb), 2)
        is_stack_row = lax.broadcasted_iota(jnp.int32, (Bt, 2, S_sb), 1) == 0
        stack_valid = (pos < S_stack) & (pos < lens[:, 0][:, None, None])
        buf_valid = (pos >= S_stack) & (pos < S_stack + lens[:, 1][:, None, None])
        valid = (is_stack_row & stack_valid) | (jnp.logical_not(is_stack_row) & buf_valid)
        e2 = jnp.where(valid, jnp.broadcast_to(e, (Bt, 2, S_sb)), jnp.float32(-1e30))
        w = _softmax_lastdim(e2)                                     # (Bt, 2, S_sb)
        result = jnp.einsum("bqs,bsd->bqd", w, sb_keys,
                            preferred_element_type=jnp.float32)      # (Bt, 2, D)

        # 4) single lane-contiguous full-block store; (B, 2*D) concat is a host-side reshape.
        out_ref[...] = result.astype(out_ref.dtype)

    return kernel


# ----------------------------- host-side wrapper -----------------------------

def _vmem_plan():
    """(vmem_limit_bytes, min_grid_steps) tuned per TPU generation."""
    try:
        cap = int(pltpu.get_tpu_info().vmem_capacity_bytes)
    except Exception:
        return 32 * 1024 * 1024, 2            # unknown generation: conservative defaults
    if cap < 96 * 1024 * 1024:
        # v7x-class: 64 MiB physical VMEM, 2 TensorCores -> headroom + >=2 grid steps so
        # dimension_semantics=("parallel",) shards the batch across both cores.
        return 40 * 1024 * 1024, 2
    # v5e / v6e: 128 MiB physical (16/32 MiB scoped default), single TensorCore -> big tiles.
    return 96 * 1024 * 1024, 1


def _choose_batch_block(B, T, S_total, D, vmem_budget_bytes, min_grid_steps=1):
    """Pick a batch tile so the pipelined inputs + intermediates fit the SAME budget that is
    passed as vmem_limit_bytes (double-buffered DMA blocks, single-buffered intermediates,
    resident PE/query)."""
    per_row = (2 * (2 * T * D            # ctx tile, bf16, double-buffered
                    + 4 * S_total        # indices, i32, double-buffered
                    + 4 * 3              # lengths, i32, double-buffered
                    + 4 * 2 * D)         # output block, f32, double-buffered
               + 2 * S_total * T         # bf16 one-hot intermediate
               + 4 * S_total * D         # f32 gathered keys
               + 16 * S_total + 64 * D)  # energies / weights / slack
    resident = 4 * S_total * D + 4 * D   # PE table + universal query (f32, constant index_map)
    bt = max(1, (vmem_budget_bytes - resident) // per_row)
    if min_grid_steps > 1 and B >= 8 * min_grid_steps:
        bt = min(bt, max(8, (B // min_grid_steps // 8) * 8))
    if bt >= B:
        return B
    return max(8, (bt // 8) * 8)         # keep the sublane (batch) dim a multiple of 8


def _fix_empty(idx, batch):
    # torch's _fix_empty_sequence replaces an empty (S == 0) sequence with a single literal
    # zero embedding row.  Index -1 never matches the one-hot iota, so the gathered row is
    # exactly zero (the positional encoding is still added afterwards, matching torch).
    if idx.shape[1] == 0:
        return jnp.full((batch, 1), -1, jnp.int32)
    return idx.astype(jnp.int32)


def init_params(model_size: int, key):
    """Only learned parameter: the UniversalAttention query vector (torch.rand-like)."""
    return {"universal_query": jax.random.uniform(key, (1, model_size), jnp.float32)}


def finished_query_configuration_encoder_forward(
        params, contextualized_input_batch, stacks, buffers, finished_tokens,
        stack_lengths, buffer_lengths, finished_tokens_lengths, *, batch_block=None):
    ctx = contextualized_input_batch
    B, T, D = ctx.shape
    out_dtype = ctx.dtype

    stacks = _fix_empty(stacks, B)
    buffers = _fix_empty(buffers, B)
    finished_tokens = _fix_empty(finished_tokens, B)
    S_stack, S_buf, S_fin = stacks.shape[1], buffers.shape[1], finished_tokens.shape[1]
    S_total = S_stack + S_buf + S_fin

    # One concatenated index block and a matching concatenated PE table (positions restart per
    # segment), so the kernel performs a single fused gather for all three attentions.
    idx = jnp.concatenate([stacks, buffers, finished_tokens], axis=1)            # (B, S_total)
    pe = sinusoidal_positional_encoding(max(S_stack, S_buf, S_fin), D, jnp.float32)
    pe_cat = jnp.concatenate([pe[:S_stack], pe[:S_buf], pe[:S_fin]], axis=0)     # (S_total, D)

    lengths = jnp.stack([stack_lengths.astype(jnp.int32),
                         buffer_lengths.astype(jnp.int32),
                         finished_tokens_lengths.astype(jnp.int32)], axis=1)     # (B, 3)

    # bf16 ctx stream: halves the dominant HBM->VMEM DMA; the gather matmul runs on the
    # native bf16 MXU path with f32 accumulation (exact for a one-hot LHS).
    ctx_c = ctx.astype(jnp.bfloat16)

    vmem_limit, min_grid_steps = _vmem_plan()
    if batch_block is None:
        batch_block = _choose_batch_block(B, T, S_total, D, vmem_limit, min_grid_steps)
    Bt = batch_block
    pad = (-B) % Bt
    if pad:
        ctx_c = jnp.pad(ctx_c, ((0, pad), (0, 0), (0, 0)))
        idx = jnp.pad(idx, ((0, pad), (0, 0)))
        lengths = jnp.pad(lengths, ((0, pad), (0, 0)), constant_values=1)
    Bp = B + pad

    kernel = _make_encoder_kernel(S_stack, S_buf, S_fin)
    out = pl.pallas_call(
        kernel,
        out_shape=jax.ShapeDtypeStruct((Bp, 2, D), out_dtype),
        grid_spec=pl.GridSpec(
            grid=(Bp // Bt,),
            in_specs=[
                pl.BlockSpec((Bt, T, D), lambda i: (i, 0, 0)),       # contextualized input (bf16)
                pl.BlockSpec((Bt, S_total), lambda i: (i, 0)),       # fused indices
                pl.BlockSpec((Bt, 3), lambda i: (i, 0)),             # fused lengths
                pl.BlockSpec((S_total, D), lambda i: (0, 0)),        # concatenated PE (resident)
                pl.BlockSpec((1, D), lambda i: (0, 0)),              # universal query (resident)
            ],
            out_specs=pl.BlockSpec((Bt, 2, D), lambda i: (i, 0, 0)),
        ),
        compiler_params=pltpu.CompilerParams(
            dimension_semantics=("parallel",),     # independent batch tiles -> 2 TCs on v7x
            vmem_limit_bytes=vmem_limit,           # same budget _choose_batch_block was sized to
        ),
    )(ctx_c, idx, lengths, pe_cat, params["universal_query"])

    # TODO(synk): EvalAttentionReporter.log is a host-side side effect; not represented here.
    # (Bp, 2, D) -> rows [stack_ctx | buffer_ctx] -> (B, 2*D), matching torch.cat(..., dim=1).
    return out.reshape(Bp, 2 * D)[:B]


# ----------------------------- pure-JAX reference -----------------------------

def _reference_forward(params, ctx, stacks, buffers, finished, slen, blen, flen):
    # f32 reference.  The kernel streams ctx in bf16, so round it here too for a
    # like-for-like comparison; all attention math below stays f32 (as in the kernel).
    ctx = ctx.astype(jnp.bfloat16).astype(jnp.float32)
    B, _, D = ctx.shape

    def gather(idx):
        return jnp.take_along_axis(ctx, idx[..., None].astype(jnp.int32), axis=1)

    def pe_add(x):
        return x + sinusoidal_positional_encoding(x.shape[1], D, x.dtype)[None]

    def attend(keys, q, lengths):
        e = jnp.einsum("bsd,bd->bs", keys, q)
        pos = jnp.arange(keys.shape[1])[None, :]
        e = jnp.where(pos < lengths[:, None], e, -1e30)
        a = jax.nn.softmax(e, axis=-1)
        return jnp.einsum("bs,bsd->bd", a, keys)

    fk, sk, bk = pe_add(gather(finished)), pe_add(gather(stacks)), pe_add(gather(buffers))
    q0 = jnp.broadcast_to(params["universal_query"], (B, D))
    tok = attend(fk, q0, flen)
    return jnp.concatenate([attend(sk, tok, slen), attend(bk, tok, blen)], axis=1)


if __name__ == "__main__":
    key = jax.random.PRNGKey(0)
    B, T, D = 2, 16, 32                 # batch, sentence tokens, model_size
    S_STACK, S_BUFFER, S_FIN = 8, 8, 8  # padded stack / buffer / finished lengths

    k_ctx, k_stk, k_buf, k_fin, k_par = jax.random.split(key, 5)
    contextualized_input_batch = jax.random.normal(k_ctx, (B, T, D), jnp.float32)
    stacks = jax.random.randint(k_stk, (B, S_STACK), 0, T, jnp.int32)
    buffers = jax.random.randint(k_buf, (B, S_BUFFER), 0, T, jnp.int32)
    finished_tokens = jax.random.randint(k_fin, (B, S_FIN), 0, T, jnp.int32)
    stack_lengths = jnp.array([3, 8], jnp.int32)
    buffer_lengths = jnp.array([8, 2], jnp.int32)
    finished_tokens_lengths = jnp.array([5, 7], jnp.int32)

    params = init_params(D, k_par)

    out = finished_query_configuration_encoder_forward(
        params, contextualized_input_batch, stacks, buffers, finished_tokens,
        stack_lengths, buffer_lengths, finished_tokens_lengths)
    out = jax.block_until_ready(out)

    ref = _reference_forward(params, contextualized_input_batch, stacks, buffers,
                             finished_tokens, stack_lengths, buffer_lengths,
                             finished_tokens_lengths)

    assert out.shape == (B, 2 * D), out.shape
    assert jnp.all(jnp.isfinite(out))
    assert jnp.allclose(out, ref, rtol=5e-2, atol=5e-2), float(jnp.max(jnp.abs(out - ref)))
    print("KERNEL_OK")
</pallas_src>

<mosaic_0001>
module attributes {stable_mosaic.version = 11 : i64} {
  func.func @kernel(%arg0: i32, %arg1: memref<2x16x32xbf16, #tpu.memory_space<vmem>>, %arg2: memref<2x24xi32, #tpu.memory_space<vmem>>, %arg3: memref<2x3xi32, #tpu.memory_space<vmem>>, %arg4: memref<24x32xf32, #tpu.memory_space<vmem>>, %arg5: memref<1x32xf32, #tpu.memory_space<vmem>>, %arg6: memref<2x2x32xf32, #tpu.memory_space<vmem>>) attributes {dimension_semantics = [#tpu.dimension_semantics<parallel>], iteration_bounds = array<i64: 1>, scalar_prefetch = 0 : i64, scratch_operands = 0 : i64, tpu.core_type = #tpu.core_type<tc>, window_params = [{transform_indices = @transform_0, window_bounds = array<i64: 2, 16, 32>}, {transform_indices = @transform_1, window_bounds = array<i64: 2, 24>}, {transform_indices = @transform_2, window_bounds = array<i64: 2, 3>}, {pipeline_mode = #tpu.pipeline_mode<synchronous>, transform_indices = @transform_3, window_bounds = array<i64: 24, 32>}, {pipeline_mode = #tpu.pipeline_mode<synchronous>, transform_indices = @transform_4, window_bounds = array<i64: 1, 32>}, {transform_indices = @transform_5, window_bounds = array<i64: 2, 2, 32>}]} {
    %c0 = arith.constant 0 : index
    %c0_0 = arith.constant 0 : index
    %c0_1 = arith.constant 0 : index
    %0 = vector.load %arg1[%c0, %c0_0, %c0_1] : memref<2x16x32xbf16, #tpu.memory_space<vmem>>, vector<2x16x32xbf16>
    %c0_2 = arith.constant 0 : index
    %c0_3 = arith.constant 0 : index
    %1 = vector.load %arg2[%c0_2, %c0_3] : memref<2x24xi32, #tpu.memory_space<vmem>>, vector<2x24xi32>
    %c0_4 = arith.constant 0 : index
    %c0_5 = arith.constant 0 : index
    %2 = vector.load %arg3[%c0_4, %c0_5] : memref<2x3xi32, #tpu.memory_space<vmem>>, vector<2x3xi32>
    %c0_6 = arith.constant 0 : index
    %c0_7 = arith.constant 0 : index
    %3 = vector.load %arg4[%c0_6, %c0_7] : memref<24x32xf32, #tpu.memory_space<vmem>>, vector<24x32xf32>
    %4 = tpu.iota {dimensions = array<i32: 2>} : vector<2x24x16xi32>
    %5 = vector.shape_cast %1 : vector<2x24xi32> to vector<2x24x1xi32>
    %6 = vector.broadcast %5 : vector<2x24x1xi32> to vector<2x24x16xi32>
    %7 = arith.cmpi eq, %4, %6 : vector<2x24x16xi32>
    %8 = arith.extui %7 : vector<2x24x16xi1> to vector<2x24x16xi32>
    %9 = arith.sitofp %8 : vector<2x24x16xi32> to vector<2x24x16xf32>
    %10 = arith.truncf %9 : vector<2x24x16xf32> to vector<2x24x16xbf16>
    "tpu.trace_start"() <{level = 10 : i32, message = "bst,btd->bsd"}> : () -> ()
    %cst = arith.constant dense<0.000000e+00> : vector<2x24x32xf32>
    %11 = tpu.matmul %10, %0, %cst {dimension_numbers = #tpu.dot_dimension_numbers<[2], [1], [1], [2], [0, 0, 0, 1, 1, 2], [0], [0]>} : vector<2x24x16xbf16>, vector<2x16x32xbf16>, vector<2x24x32xf32> -> vector<2x24x32xf32>
    "tpu.trace_stop"() : () -> ()
    %12 = vector.shape_cast %3 : vector<24x32xf32> to vector<1x24x32xf32>
    %13 = vector.broadcast %12 : vector<1x24x32xf32> to vector<2x24x32xf32>
    %14 = arith.addf %11, %13 : vector<2x24x32xf32>
    %15 = vector.extract_strided_slice %14 {offsets = [0, 16, 0], sizes = [2, 8, 32], strides = [1, 1, 1]} : vector<2x24x32xf32> to vector<2x8x32xf32>
    %c0_8 = arith.constant 0 : index
    %c0_9 = arith.constant 0 : index
    %16 = vector.load %arg5[%c0_8, %c0_9] : memref<1x32xf32, #tpu.memory_space<vmem>>, vector<1x32xf32>
    %17 = vector.shape_cast %16 : vector<1x32xf32> to vector<1x1x32xf32>
    %18 = vector.shape_cast %17 : vector<1x1x32xf32> to vector<1x1x32xf32>
    %19 = vector.broadcast %18 : vector<1x1x32xf32> to vector<2x1x32xf32>
    "tpu.trace_start"() <{level = 10 : i32, message = "bqd,bsd->bqs"}> : () -> ()
    %cst_10 = arith.constant dense<0.000000e+00> : vector<2x1x8xf32>
    %20 = tpu.matmul %19, %15, %cst_10 {dimension_numbers = #tpu.dot_dimension_numbers<[2], [2], [1], [1], [0, 0, 0, 1, 1, 1], [0], [0]>} : vector<2x1x32xf32>, vector<2x8x32xf32>, vector<2x1x8xf32> -> vector<2x1x8xf32>
    "tpu.trace_stop"() : () -> ()
    %21 = tpu.iota {dimensions = array<i32: 2>} : vector<2x1x8xi32>
    %22 = vector.extract_strided_slice %2 {offsets = [0, 2], sizes = [2, 1], strides = [1, 1]} : vector<2x3xi32> to vector<2x1xi32>
    %23 = vector.shape_cast %22 : vector<2x1xi32> to vector<2xi32>
    %24 = vector.shape_cast %23 : vector<2xi32> to vector<2x1x1xi32>
    %25 = vector.broadcast %24 : vector<2x1x1xi32> to vector<2x1x8xi32>
    %26 = arith.cmpi slt, %21, %25 : vector<2x1x8xi32>
    %cst_11 = arith.constant -1.000000e+30 : f32
    %27 = vector.broadcast %cst_11 : f32 to vector<2x1x8xf32>
    %28 = arith.select %26, %20, %27 : vector<2x1x8xi1>, vector<2x1x8xf32>
    %cst_12 = arith.constant dense<0xFF800000> : vector<2x1xf32>
    %29 = vector.multi_reduction <maximumf>, %28, %cst_12 [2] : vector<2x1x8xf32> to vector<2x1xf32>
    %30 = vector.shape_cast %29 : vector<2x1xf32> to vector<2x1x1xf32>
    %31 = vector.broadcast %30 : vector<2x1x1xf32> to vector<2x1x8xf32>
    %32 = arith.subf %28, %31 : vector<2x1x8xf32>
    %33 = math.exp %32 : vector<2x1x8xf32>
    %cst_13 = arith.constant dense<0.000000e+00> : vector<2x1xf32>
    %34 = vector.multi_reduction <add>, %33, %cst_13 [2] : vector<2x1x8xf32> to vector<2x1xf32>
    %35 = vector.shape_cast %34 : vector<2x1xf32> to vector<2x1x1xf32>
    %36 = tpu.reciprocal %35 {approx = true} : vector<2x1x1xf32> -> vector<2x1x1xf32>
    %37 = vector.broadcast %36 : vector<2x1x1xf32> to vector<2x1x8xf32>
    %38 = arith.mulf %33, %37 : vector<2x1x8xf32>
    "tpu.trace_start"() <{level = 10 : i32, message = "bqs,bsd->bqd"}> : () -> ()
    %cst_14 = arith.constant dense<0.000000e+00> : vector<2x1x32xf32>
    %39 = tpu.matmul %38, %15, %cst_14 {dimension_numbers = #tpu.dot_dimension_numbers<[2], [1], [1], [2], [0, 0, 0, 1, 1, 2], [0], [0]>} : vector<2x1x8xf32>, vector<2x8x32xf32>, vector<2x1x32xf32> -> vector<2x1x32xf32>
    "tpu.trace_stop"() : () -> ()
    %40 = vector.extract_strided_slice %14 {offsets = [0, 0, 0], sizes = [2, 16, 32], strides = [1, 1, 1]} : vector<2x24x32xf32> to vector<2x16x32xf32>
    "tpu.trace_start"() <{level = 10 : i32, message = "bqd,bsd->bqs"}> : () -> ()
    %cst_15 = arith.constant dense<0.000000e+00> : vector<2x1x16xf32>
    %41 = tpu.matmul %39, %40, %cst_15 {dimension_numbers = #tpu.dot_dimension_numbers<[2], [2], [1], [1], [0, 0, 0, 1, 1, 1], [0], [0]>} : vector<2x1x32xf32>, vector<2x16x32xf32>, vector<2x1x16xf32> -> vector<2x1x16xf32>
    "tpu.trace_stop"() : () -> ()
    %42 = tpu.iota {dimensions = array<i32: 2>} : vector<2x2x16xi32>
    %43 = tpu.iota {dimensions = array<i32: 1>} : vector<2x2x16xi32>
    %c0_i32 = arith.constant 0 : i32
    %44 = vector.broadcast %c0_i32 : i32 to vector<2x2x16xi32>
    %45 = arith.cmpi eq, %43, %44 : vector<2x2x16xi32>
    %c8_i32 = arith.constant 8 : i32
    %46 = vector.broadcast %c8_i32 : i32 to vector<2x2x16xi32>
    %47 = arith.cmpi slt, %42, %46 : vector<2x2x16xi32>
    %48 = vector.extract_strided_slice %2 {offsets = [0, 0], sizes = [2, 1], strides = [1, 1]} : vector<2x3xi32> to vector<2x1xi32>
    %49 = vector.shape_cast %48 : vector<2x1xi32> to vector<2xi32>
    %50 = vector.shape_cast %49 : vector<2xi32> to vector<2x1x1xi32>
    %51 = vector.broadcast %50 : vector<2x1x1xi32> to vector<2x2x16xi32>
    %52 = arith.cmpi slt, %42, %51 : vector<2x2x16xi32>
    %53 = arith.andi %47, %52 : vector<2x2x16xi1>
    %c8_i32_16 = arith.constant 8 : i32
    %54 = vector.broadcast %c8_i32_16 : i32 to vector<2x2x16xi32>
    %55 = arith.cmpi sge, %42, %54 : vector<2x2x16xi32>
    %56 = vector.extract_strided_slice %2 {offsets = [0, 1], sizes = [2, 1], strides = [1, 1]} : vector<2x3xi32> to vector<2x1xi32>
    %57 = vector.shape_cast %56 : vector<2x1xi32> to vector<2xi32>
    %58 = vector.shape_cast %57 : vector<2xi32> to vector<2x1x1xi32>
    %c8_i32_17 = arith.constant 8 : i32
    %59 = vector.broadcast %c8_i32_17 : i32 to vector<2x1x1xi32>
    %60 = arith.addi %59, %58 : vector<2x1x1xi32>
    %61 = vector.broadcast %60 : vector<2x1x1xi32> to vector<2x2x16xi32>
    %62 = arith.cmpi slt, %42, %61 : vector<2x2x16xi32>
    %63 = arith.andi %55, %62 : vector<2x2x16xi1>
    %64 = arith.andi %45, %53 : vector<2x2x16xi1>
    %cst_18 = arith.constant dense<true> : vector<2x2x16xi1>
    %65 = arith.xori %45, %cst_18 : vector<2x2x16xi1>
    %66 = arith.andi %65, %63 : vector<2x2x16xi1>
    %67 = arith.ori %64, %66 : vector<2x2x16xi1>
    %68 = vector.shape_cast %41 : vector<2x1x16xf32> to vector<2x1x16xf32>
    %69 = vector.broadcast %68 : vector<2x1x16xf32> to vector<2x2x16xf32>
    %cst_19 = arith.constant -1.000000e+30 : f32
    %70 = vector.broadcast %cst_19 : f32 to vector<2x2x16xf32>
    %71 = arith.select %67, %69, %70 : vector<2x2x16xi1>, vector<2x2x16xf32>
    %cst_20 = arith.constant dense<0xFF800000> : vector<2x2xf32>
    %72 = vector.multi_reduction <maximumf>, %71, %cst_20 [2] : vector<2x2x16xf32> to vector<2x2xf32>
    %73 = vector.shape_cast %72 : vector<2x2xf32> to vector<2x2x1xf32>
    %74 = vector.broadcast %73 : vector<2x2x1xf32> to vector<2x2x16xf32>
    %75 = arith.subf %71, %74 : vector<2x2x16xf32>
    %76 = math.exp %75 : vector<2x2x16xf32>
    %cst_21 = arith.constant dense<0.000000e+00> : vector<2x2xf32>
    %77 = vector.multi_reduction <add>, %76, %cst_21 [2] : vector<2x2x16xf32> to vector<2x2xf32>
    %78 = vector.shape_cast %77 : vector<2x2xf32> to vector<2x2x1xf32>
    %79 = tpu.reciprocal %78 {approx = true} : vector<2x2x1xf32> -> vector<2x2x1xf32>
    %80 = vector.broadcast %79 : vector<2x2x1xf32> to vector<2x2x16xf32>
    %81 = arith.mulf %76, %80 : vector<2x2x16xf32>
    "tpu.trace_start"() <{level = 10 : i32, message = "bqs,bsd->bqd"}> : () -> ()
    %cst_22 = arith.constant dense<0.000000e+00> : vector<2x2x32xf32>
    %82 = tpu.matmul %81, %40, %cst_22 {dimension_numbers = #tpu.dot_dimension_numbers<[2], [1], [1], [2], [0, 0, 0, 1, 1, 2], [0], [0]>} : vector<2x2x16xf32>, vector<2x16x32xf32>, vector<2x2x32xf32> -> vector<2x2x32xf32>
    "tpu.trace_stop"() : () -> ()
    %c0_23 = arith.constant 0 : index
    %c0_24 = arith.constant 0 : index
    %c0_25 = arith.constant 0 : index
    %83 = vector.load %arg6[%c0_23, %c0_24, %c0_25] : memref<2x2x32xf32, #tpu.memory_space<vmem>>, vector<2x2x32xf32>
    tpu.vector_store %arg6[%c0_23, %c0_24, %c0_25], %82 {strides = array<i32>} : memref<2x2x32xf32, #tpu.memory_space<vmem>>, vector<2x2x32xf32>,
    return
  }
  func.func @transform_0(%arg0: i32) -> (i32, i32, i32) {
    %c0_i32 = arith.constant 0 : i32
    %c0_i32_0 = arith.constant 0 : i32
    %c0_i32_1 = arith.constant 0 : i32
    return %arg0, %c0_i32, %c0_i32_0 : i32, i32, i32
  }
  func.func @transform_1(%arg0: i32) -> (i32, i32) {
    %c0_i32 = arith.constant 0 : i32
    %c0_i32_0 = arith.constant 0 : i32
    return %arg0, %c0_i32 : i32, i32
  }
  func.func @transform_2(%arg0: i32) -> (i32, i32) {
    %c0_i32 = arith.constant 0 : i32
    %c0_i32_0 = arith.constant 0 : i32
    return %arg0, %c0_i32 : i32, i32
  }
  func.func @transform_3(%arg0: i32) -> (i32, i32) {
    %c0_i32 = arith.constant 0 : i32
    %c0_i32_0 = arith.constant 0 : i32
    %c0_i32_1 = arith.constant 0 : i32
    return %c0_i32, %c0_i32_0 : i32, i32
  }
  func.func @transform_4(%arg0: i32) -> (i32, i32) {
    %c0_i32 = arith.constant 0 : i32
    %c0_i32_0 = arith.constant 0 : i32
    %c0_i32_1 = arith.constant 0 : i32
    return %c0_i32, %c0_i32_0 : i32, i32
  }
  func.func @transform_5(%arg0: i32) -> (i32, i32, i32) {
    %c0_i32 = arith.constant 0 : i32
    %c0_i32_0 = arith.constant 0 : i32
    %c0_i32_1 = arith.constant 0 : i32
    return %arg0, %c0_i32, %c0_i32_0 : i32, i32, i32
  }
}

</mosaic_0001>

<llo_original>
// kernel: tpu_custom_call.1
$region0: #{tpu_custom_call.1}
  #allocation0 [shape = 'u32[]', space=smem, size = 0x4, offset = 0x4, fixed_abs, tag = 'smem constant byte address 0x4 - core index']
  #allocation1 [shape = 'u32[144,128]{1,0:T(1,128)}', space=vmem, size = 0x12000, scoped, tag = 'internal scratch']
  %s0 = inlined_call_operand.hbm [shape: bf16[2,16,32], index: 0, kind: input, shape index: {}]
  %s1 = inlined_call_operand.hbm [shape: s32[2,24], index: 1, kind: input, shape index: {}]
  %s2 = inlined_call_operand.vmem [shape: s32[2,3], index: 2, kind: input, shape index: {}]
  %s3 = inlined_call_operand.hbm [shape: f32[24,32], index: 3, kind: input, shape index: {}]
  %s4 = inlined_call_operand.vmem [shape: f32[1,32], index: 4, kind: input, shape index: {}]
  %s5 = inlined_call_operand.hbm [shape: f32[2,2,32], index: 5, kind: output, shape index: {}]
  %s6 = sld [smem:[#allocation0]]
  $region42: #{tpu_custom_call.1} parent=0
    _
  %s8 = ssub.s32 1, %s6
  %s9 = scalar_select 0, %s8, %s6
  $region1: #{tpu_custom_call.1} parent=0
    #allocation2 [shape = 'u8[8192]{0}', space=vmem, size = 0x2000, scoped, tag = 'input window, operand 0, single buffered']
    #allocation3 [shape = 's32[1]{0}', space=sflag, size = 0x4, scoped, tag = 'scoped memory for tpu_custom_call.1']
    #allocation4 [shape = 's32[1]{0}', space=sflag, size = 0x4, scoped, tag = 'scoped memory for tpu_custom_call.1']
    #allocation5 [shape = 'u8[1024]{0}', space=vmem, size = 0x400, scoped, tag = 'input window, operand 1, single buffered']
    #allocation6 [shape = 's32[1]{0}', space=sflag, size = 0x4, scoped, tag = 'scoped memory for tpu_custom_call.1']
    #allocation7 [shape = 'u8[12288]{0}', space=vmem, size = 0x3000, scoped, tag = 'input window, operand 3, single buffered']
    #allocation8 [shape = 'u8[2048]{0}', space=vmem, size = 0x800, scoped, tag = 'output window, operand 0, single buffered']
    %10 = vsyncpa [#allocation3], 0
    %11 = vsyncpa [#allocation6], 0
    %12 = vsyncpa [#allocation4], 0
    // Predicated region
    $region2: #{tpu_custom_call.1} parent=1 // pred_check
      _
    $region3: #{tpu_custom_call.1} parent=1 // pred_check_branch
      %14 = sbr.rel (0) target = $region5
    $region4: #{tpu_custom_call.1} parent=1 // pred_region
      %s16 = ssub.s32 256, 256
      %17 = vsyncadd [#allocation3], %s16
      %s18 = sshll.u32 [#allocation2], 4
      %s19 = int_to_ptr.vmem [resolvable:$true] %s18
      %24 = dma.hbm_to_vmem [thread:$0]  %s0, 256, %s19, [#allocation3], 64, 64, 4
    $region5: #{tpu_custom_call.1} parent=1 // pred_fallthru
      _
    // Predicated region
    $region6: #{tpu_custom_call.1} parent=1 // pred_check
      _
    $region7: #{tpu_custom_call.1} parent=1 // pred_check_branch
      %26 = sbr.rel (0) target = $region9
    $region8: #{tpu_custom_call.1} parent=1 // pred_region
      %s28 = ssub.s32 32, 32
      %29 = vsyncadd [#allocation6], %s28
      %s31 = sshll.u32 [#allocation5], 4
      %s32 = int_to_ptr.vmem [resolvable:$true] %s31
      %34 = dma.hbm_to_vmem [thread:$0]  %s1, 32, %s32, [#allocation6]
    $region9: #{tpu_custom_call.1} parent=1 // pred_fallthru
      _
    // Predicated region
    $region10: #{tpu_custom_call.1} parent=1 // pred_check
      _
    $region11: #{tpu_custom_call.1} parent=1 // pred_check_branch
      %36 = sbr.rel (0) target = $region13
    $region12: #{tpu_custom_call.1} parent=1 // pred_region
      _
    $region13: #{tpu_custom_call.1} parent=1 // pred_fallthru
      _
    // Predicated region
    $region14: #{tpu_custom_call.1} parent=1 // pred_check
      _
    $region15: #{tpu_custom_call.1} parent=1 // pred_check_branch
      %38 = sbr.rel (0) target = $region17
    $region16: #{tpu_custom_call.1} parent=1 // pred_region
      %s40 = ssub.s32 384, 384
      %41 = vsyncadd [#allocation6], %s40
      %s42 = sshll.u32 [#allocation7], 4
      %s43 = int_to_ptr.vmem [resolvable:$true] %s42
      %48 = dma.hbm_to_vmem [thread:$0]  %s3, 384, %s43, [#allocation6], 128, 128, 8
    $region17: #{tpu_custom_call.1} parent=1 // pred_fallthru
      _
    // Predicated region
    $region18: #{tpu_custom_call.1} parent=1 // pred_check
      _
    $region19: #{tpu_custom_call.1} parent=1 // pred_check_branch
      %50 = sbr.rel (0) target = $region21
    $region20: #{tpu_custom_call.1} parent=1 // pred_region
      _
    $region21: #{tpu_custom_call.1} parent=1 // pred_fallthru
      _
    // Predicated region
    $region22: #{tpu_custom_call.1} parent=1 // pred_check
      _
    $region23: #{tpu_custom_call.1} parent=1 // pred_check_branch
      %52 = sbr.rel (0) target = $region25
    $region24: #{tpu_custom_call.1} parent=1 // pred_region
      %53 = dma.done [#allocation3], 256
    $region25: #{tpu_custom_call.1} parent=1 // pred_fallthru
      _
    // Predicated region
    $region26: #{tpu_custom_call.1} parent=1 // pred_check
      _
    $region27: #{tpu_custom_call.1} parent=1 // pred_check_branch
      %55 = sbr.rel (0) target = $region29
    $region28: #{tpu_custom_call.1} parent=1 // pred_region
      %56 = dma.done [#allocation6], 32
    $region29: #{tpu_custom_call.1} parent=1 // pred_fallthru
      _
    // Predicated region
    $region30: #{tpu_custom_call.1} parent=1 // pred_check
      _
    $region31: #{tpu_custom_call.1} parent=1 // pred_check_branch
      %58 = sbr.rel (0) target = $region33
    $region32: #{tpu_custom_call.1} parent=1 // pred_region
      %59 = dma.done [#allocation6], 384
    $region33: #{tpu_custom_call.1} parent=1 // pred_fallthru
      _
    %v61 = vld [vmem:[#allocation2] sm:$0xf]
    %v62 = vld [vmem:[#allocation2 + $0x4] sm:$0xf]
    %v63 = vld [vmem:[#allocation2 + $0x8] sm:$0xf]
    %v64 = vld [vmem:[#allocation2 + $0xc] sm:$0xf]
    %v65 = vld [vmem:[#allocation5] sm:$0x3]
    %v66 = vld [vmem:[%s2] sm:$0x3]
    %v67 = vld [vmem:[#allocation7] sm:$0xff]
    %v68 = vld [vmem:[#allocation7 + $0x8] sm:$0xff]
    %v69 = vld [vmem:[#allocation7 + $0x10] sm:$0xff]
    %v70 = vlaneseq
    %v71 = vand.u32 %v70, 127
    %v72 = vlaneseq
    %v73 = vshrl.u32 %v72, 7
    %v74 = vsub.s32 0, %v73
    %v75 = vrot.slane %v65, %v74
    %77 = vbcast.lane.b32.xlu0 %v75, 256
    %v78 = vpop.permute.xlu0 %77
    %s80 = sor.u32 256, 8
    %81 = vbcast.lane.b32.xlu0 %v75, %s80
    %v82 = vpop.permute.xlu0 %81
    %s84 = sor.u32 256, 16
    %85 = vbcast.lane.b32.xlu0 %v75, %s84
    %v86 = vpop.permute.xlu0 %85
    %v87 = vlaneseq
    %v88 = vshrl.u32 %v87, 7
    %v89 = vsub.s32 1, %v88
    %v90 = vrot.slane %v65, %v89
    %92 = vbcast.lane.b32.xlu0 %v90, 256
    %v93 = vpop.permute.xlu0 %92
    %s95 = sor.u32 256, 8
    %96 = vbcast.lane.b32.xlu0 %v90, %s95
    %v97 = vpop.permute.xlu0 %96
    %s99 = sor.u32 256, 16
    %100 = vbcast.lane.b32.xlu0 %v90, %s99
    %v101 = vpop.permute.xlu0 %100
    %vm102 = vcmp.eq.s32.totalorder %v71, %v78
    %vm103 = vcmp.eq.s32.totalorder %v71, %v82
    %vm104 = vcmp.eq.s32.totalorder %v71, %v86
    %vm105 = vcmp.eq.s32.totalorder %v71, %v93
    %vm106 = vcmp.eq.s32.totalorder %v71, %v97
    %vm107 = vcmp.eq.s32.totalorder %v71, %v101
    %v108 = vsel %vm102, 1, 0
    %v109 = vsel %vm103, 1, 0
    %v110 = vsel %vm104, 1, 0
    %v111 = vsel %vm105, 1, 0
    %v112 = vsel %vm106, 1, 0
    %v113 = vsel %vm107, 1, 0
    %v114 = vcvt.s32.f32 %v108
    %v115 = vcvt.s32.f32 %v109
    %v116 = vcvt.s32.f32 %v110
    %v117 = vcvt.s32.f32 %v111
    %v118 = vcvt.s32.f32 %v112
    %v119 = vcvt.s32.f32 %v113
    %v120 = vpack.c.bf16 %v115, %v114
    %v121 = vpack.c.bf16 %v116, %v116
    %v122 = vpack.c.bf16 %v118, %v117
    %v123 = vpack.c.bf16 %v119, %v119
    %v126 = vunpack.c.l.b16 %v61
    %v127 = vunpack.c.l.b16 %v62
    %v128 = vpack.c.b16 %v127, %v126
    %vm130 = vcmask 130048
    %v132 = vsel %vm130, %v120, 0
    %v135 = vsel %vm130, %v121, 0
    %137 = vmatprep.subr.bf16.mxu0 0
    %138 = vmatpush1.bf16.msra.mxu0 0
    %139 = vmatprep.subr.bf16.mxu0 0
    %140 = vmatpush1.bf16.msra.mxu0 0
    %141 = vmatprep.subr.bf16.mxu0 0
    %142 = vmatpush1.bf16.msra.mxu0 0
    %143 = vmatprep.subr.bf16.mxu0 0
    %144 = vmatpush1.bf16.msra.mxu0 0
    %145 = vmatprep.subr.bf16.mxu0 0
    %146 = vmatpush1.bf16.msra.mxu0 0
    %147 = vmatprep.subr.bf16.mxu0 0
    %148 = vmatpush1.bf16.msra.mxu0 0
    %149 = vmatprep.subr.bf16.mxu0 0
    %150 = vmatpush1.bf16.msra.mxu0 0
    %151 = vmatprep.subr.bf16.mxu0 0
    %152 = vmatpush1.bf16.msra.mxu0 %v128
    %153 = vmatprep.subr.bf16.mxu0 0
    %154 = vmatpush2.bf16.msra.mxu0 0
    %155 = vmatprep.subr.bf16.mxu0 0
    %156 = vmatpush2.bf16.msra.mxu0 0
    %157 = vmatprep.subr.bf16.mxu0 0
    %158 = vmatpush2.bf16.msra.mxu0 0
    %159 = vmatprep.subr.bf16.mxu0 0
    %160 = vmatpush2.bf16.msra.mxu0 0
    %161 = vmatprep.subr.bf16.mxu0 0
    %162 = vmatpush2.bf16.msra.mxu0 0
    %163 = vmatprep.subr.bf16.mxu0 0
    %164 = vmatpush2.bf16.msra.mxu0 0
    %165 = vmatprep.subr.bf16.mxu0 0
    %166 = vmatpush2.bf16.msra.mxu0 0
    %167 = vmatprep.subr.bf16.mxu0 0
    %168 = vmatpush2.bf16.msra.mxu0 0
    %169 = vmatprep.mubr.bf16.mxu0 0
    %170 = vmatmul.mubr.bf16.gmra.mxu0 %v132
    %v171 = vpop.f32.mrf.mxu0
    %v172 = vadd.f32 %v67, %v171
    %v173 = vpop.f32.mrf.mxu0
    %v174 = vpop.f32.mrf.mxu0
    %v175 = vadd.f32 %v68, %v174
    %v176 = vpop.f32.mrf.mxu0
    %177 = vmatprep.mubr.bf16.mxu0 0
    %178 = vmatmul.mubr.bf16.gmra.mxu0 %v135
    %v179 = vpop.f32.mrf.mxu0
    %v180 = vadd.f32 %v69, %v179
    %v181 = vpop.f32.mrf.mxu0
    %v182 = vpop.f32.mrf.mxu0
    %v183 = vpop.f32.mrf.mxu0
    %184 = vdwg.mxu0
    %v187 = vunpack.c.l.b16 %v63
    %v188 = vunpack.c.l.b16 %v64
    %v189 = vpack.c.b16 %v188, %v187
    %v192 = vsel %vm130, %v122, 0
    %v195 = vsel %vm130, %v123, 0
    %197 = vmatprep.subr.bf16.mxu0 0
    %198 = vmatpush1.bf16.msra.mxu0 0
    %199 = vmatprep.subr.bf16.mxu0 0
    %200 = vmatpush1.bf16.msra.mxu0 0
    %201 = vmatprep.subr.bf16.mxu0 0
    %202 = vmatpush1.bf16.msra.mxu0 0
    %203 = vmatprep.subr.bf16.mxu0 0
    %204 = vmatpush1.bf16.msra.mxu0 0
    %205 = vmatprep.subr.bf16.mxu0 0
    %206 = vmatpush1.bf16.msra.mxu0 0
    %207 = vmatprep.subr.bf16.mxu0 0
    %208 = vmatpush1.bf16.msra.mxu0 0
    %209 = vmatprep.subr.bf16.mxu0 0
    %210 = vmatpush1.bf16.msra.mxu0 0
    %211 = vmatprep.subr.bf16.mxu0 0
    %212 = vmatpush1.bf16.msra.mxu0 %v189
    %213 = vmatprep.subr.bf16.mxu0 0
    %214 = vmatpush2.bf16.msra.mxu0 0
    %215 = vmatprep.subr.bf16.mxu0 0
    %216 = vmatpush2.bf16.msra.mxu0 0
    %217 = vmatprep.subr.bf16.mxu0 0
    %218 = vmatpush2.bf16.msra.mxu0 0
    %219 = vmatprep.subr.bf16.mxu0 0
    %220 = vmatpush2.bf16.msra.mxu0 0
    %221 = vmatprep.subr.bf16.mxu0 0
    %222 = vmatpush2.bf16.msra.mxu0 0
    %223 = vmatprep.subr.bf16.mxu0 0
    %224 = vmatpush2.bf16.msra.mxu0 0
    %225 = vmatprep.subr.bf16.mxu0 0
    %226 = vmatpush2.bf16.msra.mxu0 0
    %227 = vmatprep.subr.bf16.mxu0 0
    %228 = vmatpush2.bf16.msra.mxu0 0
    %229 = vmatprep.mubr.bf16.mxu0 0
    %230 = vmatmul.mubr.bf16.gmra.mxu0 %v192
    %v231 = vpop.f32.mrf.mxu0
    %v232 = vadd.f32 %v67, %v231
    %v233 = vpop.f32.mrf.mxu0
    %v234 = vpop.f32.mrf.mxu0
    %v235 = vadd.f32 %v68, %v234
    %v236 = vpop.f32.mrf.mxu0
    %237 = vmatprep.mubr.bf16.mxu0 0
    %238 = vmatmul.mubr.bf16.gmra.mxu0 %v195
    %v239 = vpop.f32.mrf.mxu0
    %v240 = vadd.f32 %v69, %v239
    %v241 = vpop.f32.mrf.mxu0
    %v242 = vpop.f32.mrf.mxu0
    %v243 = vpop.f32.mrf.mxu0
    %244 = vdwg.mxu0
    %v245 = vld [vmem:[%s4] sm:$0x1]
    %vm246 = vcmask 261120
    %v248 = vsel %vm246, %v245, 0
    %v251 = vsel %vm246, %v180, 0
    %253 = vmatprep.subr.mxu0 0.0
    %254 = vmatpush1.xpose.msra.mxu0 0.0
    %255 = vmatprep.subr.mxu0 0.0
    %256 = vmatpush1.xpose.msra.mxu0 0.0
    %257 = vmatprep.subr.mxu0 0.0
    %258 = vmatpush1.xpose.msra.mxu0 0.0
    %259 = vmatprep.subr.mxu0 0.0
    %260 = vmatpush1.xpose.msra.mxu0 0.0
    %261 = vmatprep.subr.mxu0 0.0
    %262 = vmatpush1.xpose.msra.mxu0 0.0
    %263 = vmatprep.subr.mxu0 0.0
    %264 = vmatpush1.xpose.msra.mxu0 0.0
    %265 = vmatprep.subr.mxu0 0.0
    %266 = vmatpush1.xpose.msra.mxu0 0.0
    %267 = vmatprep.subr.mxu0 0.0
    %268 = vmatpush1.xpose.msra.mxu0 0.0
    %269 = vmatprep.subr.mxu0 0.0
    %270 = vmatpush1.xpose.msra.mxu0 0.0
    %271 = vmatprep.subr.mxu0 0.0
    %272 = vmatpush1.xpose.msra.mxu0 0.0
    %273 = vmatprep.subr.mxu0 0.0
    %274 = vmatpush1.xpose.msra.mxu0 0.0
    %275 = vmatprep.subr.mxu0 0.0
    %276 = vmatpush1.xpose.msra.mxu0 0.0
    %277 = vmatprep.subr.mxu0 0.0
    %278 = vmatpush1.xpose.msra.mxu0 0.0
    %279 = vmatprep.subr.mxu0 0.0
    %280 = vmatpush1.xpose.msra.mxu0 0.0
    %281 = vmatprep.subr.mxu0 0.0
    %282 = vmatpush1.xpose.msra.mxu0 0.0
    %283 = vmatprep.subr.mxu0 0.0
    %284 = vmatpush1.xpose.msra.mxu0 %v251
    %285 = vmatprep.subr.mxu0 0.0
    %286 = vmatpush2.xpose.msra.mxu0 0.0
    %287 = vmatprep.subr.mxu0 0.0
    %288 = vmatpush2.xpose.msra.mxu0 0.0
    %289 = vmatprep.subr.mxu0 0.0
    %290 = vmatpush2.xpose.msra.mxu0 0.0
    %291 = vmatprep.subr.mxu0 0.0
    %292 = vmatpush2.xpose.msra.mxu0 0.0
    %293 = vmatprep.subr.mxu0 0.0
    %294 = vmatpush2.xpose.msra.mxu0 0.0
    %295 = vmatprep.subr.mxu0 0.0
    %296 = vmatpush2.xpose.msra.mxu0 0.0
    %297 = vmatprep.subr.mxu0 0.0
    %298 = vmatpush2.xpose.msra.mxu0 0.0
    %299 = vmatprep.subr.mxu0 0.0
    %300 = vmatpush2.xpose.msra.mxu0 0.0
    %301 = vmatprep.subr.mxu0 0.0
    %302 = vmatpush2.xpose.msra.mxu0 0.0
    %303 = vmatprep.subr.mxu0 0.0
    %304 = vmatpush2.xpose.msra.mxu0 0.0
    %305 = vmatprep.subr.mxu0 0.0
    %306 = vmatpush2.xpose.msra.mxu0 0.0
    %307 = vmatprep.subr.mxu0 0.0
    %308 = vmatpush2.xpose.msra.mxu0 0.0
    %309 = vmatprep.subr.mxu0 0.0
    %310 = vmatpush2.xpose.msra.mxu0 0.0
    %311 = vmatprep.subr.mxu0 0.0
    %312 = vmatpush2.xpose.msra.mxu0 0.0
    %313 = vmatprep.subr.mxu0 0.0
    %314 = vmatpush2.xpose.msra.mxu0 0.0
    %315 = vmatprep.subr.mxu0 0.0
    %316 = vmatpush2.xpose.msra.mxu0 0.0
    %317 = vmatprep.mubr.f32.mxu0 0.0
    %318 = vmatmul.mubr.f32.gmra.mxu0 %v248
    %v319 = vpop.f32.mrf.mxu0
    %v320 = vadd.f32 0.0, %v319
    %v321 = vpop.f32.mrf.mxu0
    %322 = vdwg.mxu0
    %v324 = vsel %vm246, %v240, 0
    %326 = vmatprep.subr.mxu0 0.0
    %327 = vmatpush1.xpose.msra.mxu0 0.0
    %328 = vmatprep.subr.mxu0 0.0
    %329 = vmatpush1.xpose.msra.mxu0 0.0
    %330 = vmatprep.subr.mxu0 0.0
    %331 = vmatpush1.xpose.msra.mxu0 0.0
    %332 = vmatprep.subr.mxu0 0.0
    %333 = vmatpush1.xpose.msra.mxu0 0.0
    %334 = vmatprep.subr.mxu0 0.0
    %335 = vmatpush1.xpose.msra.mxu0 0.0
    %336 = vmatprep.subr.mxu0 0.0
    %337 = vmatpush1.xpose.msra.mxu0 0.0
    %338 = vmatprep.subr.mxu0 0.0
    %339 = vmatpush1.xpose.msra.mxu0 0.0
    %340 = vmatprep.subr.mxu0 0.0
    %341 = vmatpush1.xpose.msra.mxu0 0.0
    %342 = vmatprep.subr.mxu0 0.0
    %343 = vmatpush1.xpose.msra.mxu0 0.0
    %344 = vmatprep.subr.mxu0 0.0
    %345 = vmatpush1.xpose.msra.mxu0 0.0
    %346 = vmatprep.subr.mxu0 0.0
    %347 = vmatpush1.xpose.msra.mxu0 0.0
    %348 = vmatprep.subr.mxu0 0.0
    %349 = vmatpush1.xpose.msra.mxu0 0.0
    %350 = vmatprep.subr.mxu0 0.0
    %351 = vmatpush1.xpose.msra.mxu0 0.0
    %352 = vmatprep.subr.mxu0 0.0
    %353 = vmatpush1.xpose.msra.mxu0 0.0
    %354 = vmatprep.subr.mxu0 0.0
    %355 = vmatpush1.xpose.msra.mxu0 0.0
    %356 = vmatprep.subr.mxu0 0.0
    %357 = vmatpush1.xpose.msra.mxu0 %v324
    %358 = vmatprep.subr.mxu0 0.0
    %359 = vmatpush2.xpose.msra.mxu0 0.0
    %360 = vmatprep.subr.mxu0 0.0
    %361 = vmatpush2.xpose.msra.mxu0 0.0
    %362 = vmatprep.subr.mxu0 0.0
    %363 = vmatpush2.xpose.msra.mxu0 0.0
    %364 = vmatprep.subr.mxu0 0.0
    %365 = vmatpush2.xpose.msra.mxu0 0.0
    %366 = vmatprep.subr.mxu0 0.0
    %367 = vmatpush2.xpose.msra.mxu0 0.0
    %368 = vmatprep.subr.mxu0 0.0
    %369 = vmatpush2.xpose.msra.mxu0 0.0
    %370 = vmatprep.subr.mxu0 0.0
    %371 = vmatpush2.xpose.msra.mxu0 0.0
    %372 = vmatprep.subr.mxu0 0.0
    %373 = vmatpush2.xpose.msra.mxu0 0.0
    %374 = vmatprep.subr.mxu0 0.0
    %375 = vmatpush2.xpose.msra.mxu0 0.0
    %376 = vmatprep.subr.mxu0 0.0
    %377 = vmatpush2.xpose.msra.mxu0 0.0
    %378 = vmatprep.subr.mxu0 0.0
    %379 = vmatpush2.xpose.msra.mxu0 0.0
    %380 = vmatprep.subr.mxu0 0.0
    %381 = vmatpush2.xpose.msra.mxu0 0.0
    %382 = vmatprep.subr.mxu0 0.0
    %383 = vmatpush2.xpose.msra.mxu0 0.0
    %384 = vmatprep.subr.mxu0 0.0
    %385 = vmatpush2.xpose.msra.mxu0 0.0
    %386 = vmatprep.subr.mxu0 0.0
    %387 = vmatpush2.xpose.msra.mxu0 0.0
    %388 = vmatprep.subr.mxu0 0.0
    %389 = vmatpush2.xpose.msra.mxu0 0.0
    %390 = vmatprep.mubr.f32.mxu0 0.0
    %391 = vmatmul.mubr.f32.gmra.mxu0 %v248
    %v392 = vpop.f32.mrf.mxu0
    %v393 = vadd.f32 0.0, %v392
    %v394 = vpop.f32.mrf.mxu0
    %395 = vdwg.mxu0
    %v397 = vunpack.c.l.s4 1966171168
    %v398 = vunpack.c.0.s8 %v397
    %v399 = vlaneseq
    %v400 = vshrl.u32 %v399, 7
    %v401 = vsub.s32 %v398, %v400
    %v402 = vrot.slane %v66, %v401
    %v403 = vcombine.high %v402, %v402
    %v405 = vunpack.c.l.s4 1966171168
    %v406 = vunpack.c.0.s8 %v405
    %v407 = vlaneseq
    %v408 = vshrl.u32 %v407, 7
    %v409 = vsub.s32 %v406, %v408
    %v410 = vrot.slane %v402, %v409
    %v412 = vunpack.c.l.s4 1966171168
    %v413 = vunpack.c.0.s8 %v412
    %v414 = vlaneseq
    %v415 = vshrl.u32 %v414, 7
    %v416 = vsub.s32 %v413, %v415
    %v417 = vrot.slane %v403, %v416
    %418 = vset.pattern.permute.xlu0 2
    %419 = vperm.xlu0 %418, %v410
    %v420 = vpop.permute.xlu0 %419
    %v421 = vlaneseq
    %v422 = vshrl.u32 %v421, 7
    %v423 = vsub.s32 0, %v422
    %v424 = vrot.slane %v420, %v423
    %425 = vset.pattern.permute.xlu0 2
    %426 = vperm.xlu0 %425, %v417
    %v427 = vpop.permute.xlu0 %426
    %v428 = vlaneseq
    %v429 = vshrl.u32 %v428, 7
    %v430 = vsub.s32 0, %v429
    %v431 = vrot.slane %v427, %v430
    %vm432 = vcmp.lt.s32.totalorder %v71, %v424
    %vm433 = vcmp.lt.s32.totalorder %v71, %v431
    %v434 = vsel %vm432, %v320, -1e+30
    %v435 = vsel %vm433, %v393, -1e+30
    %vm436 = vcmask 57344
    %v437 = vsel %vm436, %v434, -inf
    %438 = vmax.xlane.f32.xlu0 %v437
    %v439 = vpop.xlane.xlu0 %438
    %v440 = vsel %vm436, %v435, -inf
    %441 = vmax.xlane.f32.xlu0 %v440
    %v442 = vpop.xlane.xlu0 %441
    %v443 = vsub.f32 %v434, %v439
    %v444 = vsub.f32 %v435, %v442
    %v445 = vmul.f32 %v443, 1.442695
    %v446 = vpow.pop %v445
    %v447 = vmul.f32 %v444, 1.442695
    %v448 = vpow.pop %v447
    %v449 = vsel %vm436, %v446, 0.0
    %450 = vadd.xlane.f32.xlu0 %v449
    %v451 = vpop.xlane.xlu0 %450
    %v452 = vsel %vm436, %v448, 0.0
    %453 = vadd.xlane.f32.xlu0 %v452
    %v454 = vpop.xlane.xlu0 %453
    %v455 = vrcp.pop %v451
    %v456 = vrcp.pop %v454
    %v457 = vmul.f32 %v446, %v455
    %v458 = vmul.f32 %v448, %v456
    %vm459 = vcmask 64512
    %v461 = vsel %vm459, %v457, 0
    %463 = vmatprep.subr.mxu0 0.0
    %464 = vmatpush1.msra.mxu0 0.0
    %465 = vmatprep.subr.mxu0 0.0
    %466 = vmatpush1.msra.mxu0 0.0
    %467 = vmatprep.subr.mxu0 0.0
    %468 = vmatpush1.msra.mxu0 0.0
    %469 = vmatprep.subr.mxu0 0.0
    %470 = vmatpush1.msra.mxu0 0.0
    %471 = vmatprep.subr.mxu0 0.0
    %472 = vmatpush1.msra.mxu0 0.0
    %473 = vmatprep.subr.mxu0 0.0
    %474 = vmatpush1.msra.mxu0 0.0
    %475 = vmatprep.subr.mxu0 0.0
    %476 = vmatpush1.msra.mxu0 0.0
    %477 = vmatprep.subr.mxu0 0.0
    %478 = vmatpush1.msra.mxu0 0.0
    %479 = vmatprep.subr.mxu0 0.0
    %480 = vmatpush1.msra.mxu0 0.0
    %481 = vmatprep.subr.mxu0 0.0
    %482 = vmatpush1.msra.mxu0 0.0
    %483 = vmatprep.subr.mxu0 0.0
    %484 = vmatpush1.msra.mxu0 0.0
    %485 = vmatprep.subr.mxu0 0.0
    %486 = vmatpush1.msra.mxu0 0.0
    %487 = vmatprep.subr.mxu0 0.0
    %488 = vmatpush1.msra.mxu0 0.0
    %489 = vmatprep.subr.mxu0 0.0
    %490 = vmatpush1.msra.mxu0 0.0
    %491 = vmatprep.subr.mxu0 0.0
    %492 = vmatpush1.msra.mxu0 0.0
    %493 = vmatprep.subr.mxu0 0.0
    %494 = vmatpush1.msra.mxu0 %v180
    %495 = vmatprep.subr.mxu0 0.0
    %496 = vmatpush2.msra.mxu0 0.0
    %497 = vmatprep.subr.mxu0 0.0
    %498 = vmatpush2.msra.mxu0 0.0
    %499 = vmatprep.subr.mxu0 0.0
    %500 = vmatpush2.msra.mxu0 0.0
    %501 = vmatprep.subr.mxu0 0.0
    %502 = vmatpush2.msra.mxu0 0.0
    %503 = vmatprep.subr.mxu0 0.0
    %504 = vmatpush2.msra.mxu0 0.0
    %505 = vmatprep.subr.mxu0 0.0
    %506 = vmatpush2.msra.mxu0 0.0
    %507 = vmatprep.subr.mxu0 0.0
    %508 = vmatpush2.msra.mxu0 0.0
    %509 = vmatprep.subr.mxu0 0.0
    %510 = vmatpush2.msra.mxu0 0.0
    %511 = vmatprep.subr.mxu0 0.0
    %512 = vmatpush2.msra.mxu0 0.0
    %513 = vmatprep.subr.mxu0 0.0
    %514 = vmatpush2.msra.mxu0 0.0
    %515 = vmatprep.subr.mxu0 0.0
    %516 = vmatpush2.msra.mxu0 0.0
    %517 = vmatprep.subr.mxu0 0.0
    %518 = vmatpush2.msra.mxu0 0.0
    %519 = vmatprep.subr.mxu0 0.0
    %520 = vmatpush2.msra.mxu0 0.0
    %521 = vmatprep.subr.mxu0 0.0
    %522 = vmatpush2.msra.mxu0 0.0
    %523 = vmatprep.subr.mxu0 0.0
    %524 = vmatpush2.msra.mxu0 0.0
    %525 = vmatprep.subr.mxu0 0.0
    %526 = vmatpush2.msra.mxu0 0.0
    %527 = vmatprep.mubr.f32.mxu0 0.0
    %528 = vmatmul.mubr.f32.gmra.mxu0 %v461
    %v529 = vpop.f32.mrf.mxu0
    %v530 = vadd.f32 0.0, %v529
    %v531 = vpop.f32.mrf.mxu0
    %532 = vdwg.mxu0
    %v534 = vsel %vm459, %v458, 0
    %536 = vmatprep.subr.mxu0 0.0
    %537 = vmatpush1.msra.mxu0 0.0
    %538 = vmatprep.subr.mxu0 0.0
    %539 = vmatpush1.msra.mxu0 0.0
    %540 = vmatprep.subr.mxu0 0.0
    %541 = vmatpush1.msra.mxu0 0.0
    %542 = vmatprep.subr.mxu0 0.0
    %543 = vmatpush1.msra.mxu0 0.0
    %544 = vmatprep.subr.mxu0 0.0
    %545 = vmatpush1.msra.mxu0 0.0
    %546 = vmatprep.subr.mxu0 0.0
    %547 = vmatpush1.msra.mxu0 0.0
    %548 = vmatprep.subr.mxu0 0.0
    %549 = vmatpush1.msra.mxu0 0.0
    %550 = vmatprep.subr.mxu0 0.0
    %551 = vmatpush1.msra.mxu0 0.0
    %552 = vmatprep.subr.mxu0 0.0
    %553 = vmatpush1.msra.mxu0 0.0
    %554 = vmatprep.subr.mxu0 0.0
    %555 = vmatpush1.msra.mxu0 0.0
    %556 = vmatprep.subr.mxu0 0.0
    %557 = vmatpush1.msra.mxu0 0.0
    %558 = vmatprep.subr.mxu0 0.0
    %559 = vmatpush1.msra.mxu0 0.0
    %560 = vmatprep.subr.mxu0 0.0
    %561 = vmatpush1.msra.mxu0 0.0
    %562 = vmatprep.subr.mxu0 0.0
    %563 = vmatpush1.msra.mxu0 0.0
    %564 = vmatprep.subr.mxu0 0.0
    %565 = vmatpush1.msra.mxu0 0.0
    %566 = vmatprep.subr.mxu0 0.0
    %567 = vmatpush1.msra.mxu0 %v240
    %568 = vmatprep.subr.mxu0 0.0
    %569 = vmatpush2.msra.mxu0 0.0
    %570 = vmatprep.subr.mxu0 0.0
    %571 = vmatpush2.msra.mxu0 0.0
    %572 = vmatprep.subr.mxu0 0.0
    %573 = vmatpush2.msra.mxu0 0.0
    %574 = vmatprep.subr.mxu0 0.0
    %575 = vmatpush2.msra.mxu0 0.0
    %576 = vmatprep.subr.mxu0 0.0
    %577 = vmatpush2.msra.mxu0 0.0
    %578 = vmatprep.subr.mxu0 0.0
    %579 = vmatpush2.msra.mxu0 0.0
    %580 = vmatprep.subr.mxu0 0.0
    %581 = vmatpush2.msra.mxu0 0.0
    %582 = vmatprep.subr.mxu0 0.0
    %583 = vmatpush2.msra.mxu0 0.0
    %584 = vmatprep.subr.mxu0 0.0
    %585 = vmatpush2.msra.mxu0 0.0
    %586 = vmatprep.subr.mxu0 0.0
    %587 = vmatpush2.msra.mxu0 0.0
    %588 = vmatprep.subr.mxu0 0.0
    %589 = vmatpush2.msra.mxu0 0.0
    %590 = vmatprep.subr.mxu0 0.0
    %591 = vmatpush2.msra.mxu0 0.0
    %592 = vmatprep.subr.mxu0 0.0
    %593 = vmatpush2.msra.mxu0 0.0
    %594 = vmatprep.subr.mxu0 0.0
    %595 = vmatpush2.msra.mxu0 0.0
    %596 = vmatprep.subr.mxu0 0.0
    %597 = vmatpush2.msra.mxu0 0.0
    %598 = vmatprep.subr.mxu0 0.0
    %599 = vmatpush2.msra.mxu0 0.0
    %600 = vmatprep.mubr.f32.mxu0 0.0
    %601 = vmatmul.mubr.f32.gmra.mxu0 %v534
    %v602 = vpop.f32.mrf.mxu0
    %v603 = vadd.f32 0.0, %v602
    %v604 = vpop.f32.mrf.mxu0
    %605 = vdwg.mxu0
    %v607 = vsel %vm246, %v530, 0
    %v610 = vsel %vm246, %v172, 0
    %v613 = vsel %vm246, %v175, 0
    %615 = vmatprep.subr.mxu0 0.0
    %616 = vmatpush1.xpose.msra.mxu0 0.0
    %617 = vmatprep.subr.mxu0 0.0
    %618 = vmatpush1.xpose.msra.mxu0 0.0
    %619 = vmatprep.subr.mxu0 0.0
    %620 = vmatpush1.xpose.msra.mxu0 0.0
    %621 = vmatprep.subr.mxu0 0.0
    %622 = vmatpush1.xpose.msra.mxu0 0.0
    %623 = vmatprep.subr.mxu0 0.0
    %624 = vmatpush1.xpose.msra.mxu0 0.0
    %625 = vmatprep.subr.mxu0 0.0
    %626 = vmatpush1.xpose.msra.mxu0 0.0
    %627 = vmatprep.subr.mxu0 0.0
    %628 = vmatpush1.xpose.msra.mxu0 0.0
    %629 = vmatprep.subr.mxu0 0.0
    %630 = vmatpush1.xpose.msra.mxu0 0.0
    %631 = vmatprep.subr.mxu0 0.0
    %632 = vmatpush1.xpose.msra.mxu0 0.0
    %633 = vmatprep.subr.mxu0 0.0
    %634 = vmatpush1.xpose.msra.mxu0 0.0
    %635 = vmatprep.subr.mxu0 0.0
    %636 = vmatpush1.xpose.msra.mxu0 0.0
    %637 = vmatprep.subr.mxu0 0.0
    %638 = vmatpush1.xpose.msra.mxu0 0.0
    %639 = vmatprep.subr.mxu0 0.0
    %640 = vmatpush1.xpose.msra.mxu0 0.0
    %641 = vmatprep.subr.mxu0 0.0
    %642 = vmatpush1.xpose.msra.mxu0 0.0
    %643 = vmatprep.subr.mxu0 0.0
    %644 = vmatpush1.xpose.msra.mxu0 %v613
    %645 = vmatprep.subr.mxu0 0.0
    %646 = vmatpush1.xpose.msra.mxu0 %v610
    %647 = vmatprep.subr.mxu0 0.0
    %648 = vmatpush2.xpose.msra.mxu0 0.0
    %649 = vmatprep.subr.mxu0 0.0
    %650 = vmatpush2.xpose.msra.mxu0 0.0
    %651 = vmatprep.subr.mxu0 0.0
    %652 = vmatpush2.xpose.msra.mxu0 0.0
    %653 = vmatprep.subr.mxu0 0.0
    %654 = vmatpush2.xpose.msra.mxu0 0.0
    %655 = vmatprep.subr.mxu0 0.0
    %656 = vmatpush2.xpose.msra.mxu0 0.0
    %657 = vmatprep.subr.mxu0 0.0
    %658 = vmatpush2.xpose.msra.mxu0 0.0
    %659 = vmatprep.subr.mxu0 0.0
    %660 = vmatpush2.xpose.msra.mxu0 0.0
    %661 = vmatprep.subr.mxu0 0.0
    %662 = vmatpush2.xpose.msra.mxu0 0.0
    %663 = vmatprep.subr.mxu0 0.0
    %664 = vmatpush2.xpose.msra.mxu0 0.0
    %665 = vmatprep.subr.mxu0 0.0
    %666 = vmatpush2.xpose.msra.mxu0 0.0
    %667 = vmatprep.subr.mxu0 0.0
    %668 = vmatpush2.xpose.msra.mxu0 0.0
    %669 = vmatprep.subr.mxu0 0.0
    %670 = vmatpush2.xpose.msra.mxu0 0.0
    %671 = vmatprep.subr.mxu0 0.0
    %672 = vmatpush2.xpose.msra.mxu0 0.0
    %673 = vmatprep.subr.mxu0 0.0
    %674 = vmatpush2.xpose.msra.mxu0 0.0
    %675 = vmatprep.subr.mxu0 0.0
    %676 = vmatpush2.xpose.msra.mxu0 0.0
    %677 = vmatprep.subr.mxu0 0.0
    %678 = vmatpush2.xpose.msra.mxu0 0.0
    %679 = vmatprep.mubr.f32.mxu0 0.0
    %680 = vmatmul.mubr.f32.gmra.mxu0 %v607
    %v681 = vpop.f32.mrf.mxu0
    %v682 = vadd.f32 0.0, %v681
    %v683 = vpop.f32.mrf.mxu0
    %684 = vdwg.mxu0
    %v686 = vsel %vm246, %v603, 0
    %v689 = vsel %vm246, %v232, 0
    %v692 = vsel %vm246, %v235, 0
    %694 = vmatprep.subr.mxu0 0.0
    %695 = vmatpush1.xpose.msra.mxu0 0.0
    %696 = vmatprep.subr.mxu0 0.0
    %697 = vmatpush1.xpose.msra.mxu0 0.0
    %698 = vmatprep.subr.mxu0 0.0
    %699 = vmatpush1.xpose.msra.mxu0 0.0
    %700 = vmatprep.subr.mxu0 0.0
    %701 = vmatpush1.xpose.msra.mxu0 0.0
    %702 = vmatprep.subr.mxu0 0.0
    %703 = vmatpush1.xpose.msra.mxu0 0.0
    %704 = vmatprep.subr.mxu0 0.0
    %705 = vmatpush1.xpose.msra.mxu0 0.0
    %706 = vmatprep.subr.mxu0 0.0
    %707 = vmatpush1.xpose.msra.mxu0 0.0
    %708 = vmatprep.subr.mxu0 0.0
    %709 = vmatpush1.xpose.msra.mxu0 0.0
    %710 = vmatprep.subr.mxu0 0.0
    %711 = vmatpush1.xpose.msra.mxu0 0.0
    %712 = vmatprep.subr.mxu0 0.0
    %713 = vmatpush1.xpose.msra.mxu0 0.0
    %714 = vmatprep.subr.mxu0 0.0
    %715 = vmatpush1.xpose.msra.mxu0 0.0
    %716 = vmatprep.subr.mxu0 0.0
    %717 = vmatpush1.xpose.msra.mxu0 0.0
    %718 = vmatprep.subr.mxu0 0.0
    %719 = vmatpush1.xpose.msra.mxu0 0.0
    %720 = vmatprep.subr.mxu0 0.0
    %721 = vmatpush1.xpose.msra.mxu0 0.0
    %722 = vmatprep.subr.mxu0 0.0
    %723 = vmatpush1.xpose.msra.mxu0 %v692
    %724 = vmatprep.subr.mxu0 0.0
    %725 = vmatpush1.xpose.msra.mxu0 %v689
    %726 = vmatprep.subr.mxu0 0.0
    %727 = vmatpush2.xpose.msra.mxu0 0.0
    %728 = vmatprep.subr.mxu0 0.0
    %729 = vmatpush2.xpose.msra.mxu0 0.0
    %730 = vmatprep.subr.mxu0 0.0
    %731 = vmatpush2.xpose.msra.mxu0 0.0
    %732 = vmatprep.subr.mxu0 0.0
    %733 = vmatpush2.xpose.msra.mxu0 0.0
    %734 = vmatprep.subr.mxu0 0.0
    %735 = vmatpush2.xpose.msra.mxu0 0.0
    %736 = vmatprep.subr.mxu0 0.0
    %737 = vmatpush2.xpose.msra.mxu0 0.0
    %738 = vmatprep.subr.mxu0 0.0
    %739 = vmatpush2.xpose.msra.mxu0 0.0
    %740 = vmatprep.subr.mxu0 0.0
    %741 = vmatpush2.xpose.msra.mxu0 0.0
    %742 = vmatprep.subr.mxu0 0.0
    %743 = vmatpush2.xpose.msra.mxu0 0.0
    %744 = vmatprep.subr.mxu0 0.0
    %745 = vmatpush2.xpose.msra.mxu0 0.0
    %746 = vmatprep.subr.mxu0 0.0
    %747 = vmatpush2.xpose.msra.mxu0 0.0
    %748 = vmatprep.subr.mxu0 0.0
    %749 = vmatpush2.xpose.msra.mxu0 0.0
    %750 = vmatprep.subr.mxu0 0.0
    %751 = vmatpush2.xpose.msra.mxu0 0.0
    %752 = vmatprep.subr.mxu0 0.0
    %753 = vmatpush2.xpose.msra.mxu0 0.0
    %754 = vmatprep.subr.mxu0 0.0
    %755 = vmatpush2.xpose.msra.mxu0 0.0
    %756 = vmatprep.subr.mxu0 0.0
    %757 = vmatpush2.xpose.msra.mxu0 0.0
    %758 = vmatprep.mubr.f32.mxu0 0.0
    %759 = vmatmul.mubr.f32.gmra.mxu0 %v686
    %v760 = vpop.f32.mrf.mxu0
    %v761 = vadd.f32 0.0, %v760
    %v762 = vpop.f32.mrf.mxu0
    %763 = vdwg.mxu0
    %v764 = vlaneseq
    %v765 = vshrl.u32 %v764, 7
    %vm766 = vcmp.eq.s32.totalorder %v765, 0
    %vm767 = vcmp.lt.s32.totalorder %v71, 8
    %v768 = vlaneseq
    %v769 = vshrl.u32 %v768, 7
    %v770 = vsub.s32 0, %v769
    %v771 = vrot.slane %v410, %v770
    %v772 = vlaneseq
    %v773 = vshrl.u32 %v772, 7
    %v774 = vsub.s32 0, %v773
    %v775 = vrot.slane %v417, %v774
    %776 = vset.pattern.permute.xlu0 0
    %777 = vperm.xlu0 %776, %v771
    %v778 = vpop.permute.xlu0 %777
    %779 = vset.pattern.permute.xlu0 0
    %780 = vperm.xlu0 %779, %v775
    %v781 = vpop.permute.xlu0 %780
    %vm782 = vcmp.lt.s32.totalorder %v71, %v778
    %vm783 = vcmp.lt.s32.totalorder %v71, %v781
    %vm784 = vmand %vm767, %vm782
    %vm785 = vmand %vm767, %vm783
    %vm786 = vcmp.ge.s32.totalorder %v71, 8
    %v787 = vadd.s32 %v410, 8
    %v788 = vadd.s32 %v417, 8
    %v789 = vlaneseq
    %v790 = vshrl.u32 %v789, 7
    %v791 = vsub.s32 0, %v790
    %v792 = vrot.slane %v787, %v791
    %v793 = vlaneseq
    %v794 = vshrl.u32 %v793, 7
    %v795 = vsub.s32 0, %v794
    %v796 = vrot.slane %v788, %v795
    %797 = vset.pattern.permute.xlu0 1
    %798 = vperm.xlu0 %797, %v792
    %v799 = vpop.permute.xlu0 %798
    %800 = vset.pattern.permute.xlu0 1
    %801 = vperm.xlu0 %800, %v796
    %v802 = vpop.permute.xlu0 %801
    %vm803 = vcmp.lt.s32.totalorder %v71, %v799
    %vm804 = vcmp.lt.s32.totalorder %v71, %v802
    %vm805 = vmand %vm786, %vm803
    %vm806 = vmand %vm786, %vm804
    %vm807 = vmand %vm766, %vm784
    %vm808 = vmand %vm766, %vm785
    %vm809 = vmxor %vm766, 1
    %vm810 = vmand %vm809, %vm805
    %vm811 = vmand %vm809, %vm806
    %vm812 = vmor %vm807, %vm810
    %vm813 = vmor %vm808, %vm811
    %v814 = vlaneseq
    %v815 = vshrl.u32 %v814, 7
    %v816 = vsub.s32 0, %v815
    %v817 = vrot.slane %v682, %v816
    %v818 = vlaneseq
    %v819 = vshrl.u32 %v818, 7
    %v820 = vsub.s32 0, %v819
    %v821 = vrot.slane %v761, %v820
    %v822 = vsel %vm812, %v817, -1e+30
    %v823 = vsel %vm813, %v821, -1e+30
    %vm824 = vcmask 123904
    %v825 = vsel %vm824, %v822, -inf
    %826 = vmax.xlane.f32.xlu0 %v825
    %v827 = vpop.xlane.xlu0 %826
    %v828 = vsel %vm824, %v823, -inf
    %829 = vmax.xlane.f32.xlu0 %v828
    %v830 = vpop.xlane.xlu0 %829
    %v831 = vsub.f32 %v822, %v827
    %v832 = vsub.f32 %v823, %v830
    %v833 = vmul.f32 %v831, 1.442695
    %v834 = vpow.pop %v833
    %v835 = vmul.f32 %v832, 1.442695
    %v836 = vpow.pop %v835
    %v837 = vsel %vm824, %v834, 0.0
    %838 = vadd.xlane.f32.xlu0 %v837
    %v839 = vpop.xlane.xlu0 %838
    %v840 = vsel %vm824, %v836, 0.0
    %841 = vadd.xlane.f32.xlu0 %v840
    %v842 = vpop.xlane.xlu0 %841
    %v843 = vrcp.pop %v839
    %v844 = vrcp.pop %v842
    %v845 = vmul.f32 %v834, %v843
    %v846 = vmul.f32 %v836, %v844
    %v848 = vsel %vm130, %v845, 0
    %850 = vmatprep.subr.mxu0 0.0
    %851 = vmatpush1.msra.mxu0 0.0
    %852 = vmatprep.subr.mxu0 0.0
    %853 = vmatpush1.msra.mxu0 0.0
    %854 = vmatprep.subr.mxu0 0.0
    %855 = vmatpush1.msra.mxu0 0.0
    %856 = vmatprep.subr.mxu0 0.0
    %857 = vmatpush1.msra.mxu0 0.0
    %858 = vmatprep.subr.mxu0 0.0
    %859 = vmatpush1.msra.mxu0 0.0
    %860 = vmatprep.subr.mxu0 0.0
    %861 = vmatpush1.msra.mxu0 0.0
    %862 = vmatprep.subr.mxu0 0.0
    %863 = vmatpush1.msra.mxu0 0.0
    %864 = vmatprep.subr.mxu0 0.0
    %865 = vmatpush1.msra.mxu0 0.0
    %866 = vmatprep.subr.mxu0 0.0
    %867 = vmatpush1.msra.mxu0 0.0
    %868 = vmatprep.subr.mxu0 0.0
    %869 = vmatpush1.msra.mxu0 0.0
    %870 = vmatprep.subr.mxu0 0.0
    %871 = vmatpush1.msra.mxu0 0.0
    %872 = vmatprep.subr.mxu0 0.0
    %873 = vmatpush1.msra.mxu0 0.0
    %874 = vmatprep.subr.mxu0 0.0
    %875 = vmatpush1.msra.mxu0 0.0
    %876 = vmatprep.subr.mxu0 0.0
    %877 = vmatpush1.msra.mxu0 0.0
    %878 = vmatprep.subr.mxu0 0.0
    %879 = vmatpush1.msra.mxu0 %v175
    %880 = vmatprep.subr.mxu0 0.0
    %881 = vmatpush1.msra.mxu0 %v172
    %882 = vmatprep.subr.mxu0 0.0
    %883 = vmatpush2.msra.mxu0 0.0
    %884 = vmatprep.subr.mxu0 0.0
    %885 = vmatpush2.msra.mxu0 0.0
    %886 = vmatprep.subr.mxu0 0.0
    %887 = vmatpush2.msra.mxu0 0.0
    %888 = vmatprep.subr.mxu0 0.0
    %889 = vmatpush2.msra.mxu0 0.0
    %890 = vmatprep.subr.mxu0 0.0
    %891 = vmatpush2.msra.mxu0 0.0
    %892 = vmatprep.subr.mxu0 0.0
    %893 = vmatpush2.msra.mxu0 0.0
    %894 = vmatprep.subr.mxu0 0.0
    %895 = vmatpush2.msra.mxu0 0.0
    %896 = vmatprep.subr.mxu0 0.0
    %897 = vmatpush2.msra.mxu0 0.0
    %898 = vmatprep.subr.mxu0 0.0
    %899 = vmatpush2.msra.mxu0 0.0
    %900 = vmatprep.subr.mxu0 0.0
    %901 = vmatpush2.msra.mxu0 0.0
    %902 = vmatprep.subr.mxu0 0.0
    %903 = vmatpush2.msra.mxu0 0.0
    %904 = vmatprep.subr.mxu0 0.0
    %905 = vmatpush2.msra.mxu0 0.0
    %906 = vmatprep.subr.mxu0 0.0
    %907 = vmatpush2.msra.mxu0 0.0
    %908 = vmatprep.subr.mxu0 0.0
    %909 = vmatpush2.msra.mxu0 0.0
    %910 = vmatprep.subr.mxu0 0.0
    %911 = vmatpush2.msra.mxu0 0.0
    %912 = vmatprep.subr.mxu0 0.0
    %913 = vmatpush2.msra.mxu0 0.0
    %914 = vmatprep.mubr.f32.mxu0 0.0
    %915 = vmatmul.mubr.f32.gmra.mxu0 %v848
    %v916 = vpop.f32.mrf.mxu0
    %v917 = vadd.f32 0.0, %v916
    %v918 = vpop.f32.mrf.mxu0
    %919 = vdwg.mxu0
    %v921 = vsel %vm130, %v846, 0
    %923 = vmatprep.subr.mxu0 0.0
    %924 = vmatpush1.msra.mxu0 0.0
    %925 = vmatprep.subr.mxu0 0.0
    %926 = vmatpush1.msra.mxu0 0.0
    %927 = vmatprep.subr.mxu0 0.0
    %928 = vmatpush1.msra.mxu0 0.0
    %929 = vmatprep.subr.mxu0 0.0
    %930 = vmatpush1.msra.mxu0 0.0
    %931 = vmatprep.subr.mxu0 0.0
    %932 = vmatpush1.msra.mxu0 0.0
    %933 = vmatprep.subr.mxu0 0.0
    %934 = vmatpush1.msra.mxu0 0.0
    %935 = vmatprep.subr.mxu0 0.0
    %936 = vmatpush1.msra.mxu0 0.0
    %937 = vmatprep.subr.mxu0 0.0
    %938 = vmatpush1.msra.mxu0 0.0
    %939 = vmatprep.subr.mxu0 0.0
    %940 = vmatpush1.msra.mxu0 0.0
    %941 = vmatprep.subr.mxu0 0.0
    %942 = vmatpush1.msra.mxu0 0.0
    %943 = vmatprep.subr.mxu0 0.0
    %944 = vmatpush1.msra.mxu0 0.0
    %945 = vmatprep.subr.mxu0 0.0
    %946 = vmatpush1.msra.mxu0 0.0
    %947 = vmatprep.subr.mxu0 0.0
    %948 = vmatpush1.msra.mxu0 0.0
    %949 = vmatprep.subr.mxu0 0.0
    %950 = vmatpush1.msra.mxu0 0.0
    %951 = vmatprep.subr.mxu0 0.0
    %952 = vmatpush1.msra.mxu0 %v235
    %953 = vmatprep.subr.mxu0 0.0
    %954 = vmatpush1.msra.mxu0 %v232
    %955 = vmatprep.subr.mxu0 0.0
    %956 = vmatpush2.msra.mxu0 0.0
    %957 = vmatprep.subr.mxu0 0.0
    %958 = vmatpush2.msra.mxu0 0.0
    %959 = vmatprep.subr.mxu0 0.0
    %960 = vmatpush2.msra.mxu0 0.0
    %961 = vmatprep.subr.mxu0 0.0
    %962 = vmatpush2.msra.mxu0 0.0
    %963 = vmatprep.subr.mxu0 0.0
    %964 = vmatpush2.msra.mxu0 0.0
    %965 = vmatprep.subr.mxu0 0.0
    %966 = vmatpush2.msra.mxu0 0.0
    %967 = vmatprep.subr.mxu0 0.0
    %968 = vmatpush2.msra.mxu0 0.0
    %969 = vmatprep.subr.mxu0 0.0
    %970 = vmatpush2.msra.mxu0 0.0
    %971 = vmatprep.subr.mxu0 0.0
    %972 = vmatpush2.msra.mxu0 0.0
    %973 = vmatprep.subr.mxu0 0.0
    %974 = vmatpush2.msra.mxu0 0.0
    %975 = vmatprep.subr.mxu0 0.0
    %976 = vmatpush2.msra.mxu0 0.0
    %977 = vmatprep.subr.mxu0 0.0
    %978 = vmatpush2.msra.mxu0 0.0
    %979 = vmatprep.subr.mxu0 0.0
    %980 = vmatpush2.msra.mxu0 0.0
    %981 = vmatprep.subr.mxu0 0.0
    %982 = vmatpush2.msra.mxu0 0.0
    %983 = vmatprep.subr.mxu0 0.0
    %984 = vmatpush2.msra.mxu0 0.0
    %985 = vmatprep.subr.mxu0 0.0
    %986 = vmatpush2.msra.mxu0 0.0
    %987 = vmatprep.mubr.f32.mxu0 0.0
    %988 = vmatmul.mubr.f32.gmra.mxu0 %v921
    %v989 = vpop.f32.mrf.mxu0
    %v990 = vadd.f32 0.0, %v989
    %v991 = vpop.f32.mrf.mxu0
    %992 = vdwg.mxu0
    %vm993 = vcmask 254976
    %994 = vst.msk [vmem:[#allocation8] sm:$0x3] %vm993, %v917
    %995 = vst.msk [vmem:[#allocation8 + $0x2] sm:$0x3] %vm993, %v990
    // Predicated region
    $region34: #{tpu_custom_call.1} parent=1 // pred_check
      _
    $region35: #{tpu_custom_call.1} parent=1 // pred_check_branch
      %997 = sbr.rel (0) target = $region37
    $region36: #{tpu_custom_call.1} parent=1 // pred_region
      %s999 = ssub.s32 64, 64
      %1000 = vsyncadd [#allocation4], %s999
      %s1001 = sshll.u32 [#allocation8], 4
      %s1002 = int_to_ptr.vmem [resolvable:$true] %s1001
      %1007 = dma.vmem_to_hbm [thread:$0]  %s1002, 64, %s5, [#allocation4], 32, 32, 2
    $region37: #{tpu_custom_call.1} parent=1 // pred_fallthru
      _
    // Predicated region
    $region38: #{tpu_custom_call.1} parent=1 // pred_check
      _
    $region39: #{tpu_custom_call.1} parent=1 // pred_check_branch
      %1009 = sbr.rel (0) target = $region41
    $region40: #{tpu_custom_call.1} parent=1 // pred_region
      %1010 = dma.done [#allocation4], 64
    $region41: #{tpu_custom_call.1} parent=1 // pred_fallthru
      _
    %1011 = vsyncpa [#allocation3], 1
    %1012 = vsyncpa [#allocation6], 1
    %1013 = vsyncpa [#allocation4], 1

</llo_original>
